<compile_context>
chip_gen: v7x
topology: tpu7x:2x2x1
jax: 0.10.0
libtpu: 0.0.40
codegen_flags: <defaults>
</compile_context>

<pallas_src>
import jax
import jax.numpy as jnp
from jax.experimental import pallas as pl
from jax.experimental.pallas import tpu as pltpu


def _transition_up_kernel(x_ref, g_ref, b_ref, o_ref):
    """One (batch, row-tile) grid step.

    x_ref: (Cin, TH2, 2W)       row-pair packed input slab (contiguous NCHW view)
    g_ref: (Cin, 2W, Cout*8W)   weight-folded scatter matrices (bf16, co-major)
    b_ref: (Cout, 1, 8W)        bias rows (f32)
    o_ref: (Cout, TH2, 8W)      4-row packed output slab (contiguous NCHW view)
    """
    cin = x_ref.shape[0]
    cout = o_ref.shape[0]
    w8 = o_ref.shape[-1]

    # bf16 operands + f32 accumulation -> full-rate MXU path.
    xb = x_ref[...].astype(jnp.bfloat16)

    # Channel contraction + (kh, kw) scatter + row packing, all fused into Cin
    # lane-dense matmuls (K = 2W, N = Cout*8W).  The short unrolled accumulation
    # chain is fine at Transition_Up's modest channel counts.
    # TODO(synk): for large Cin use lax.fori_loop / grid tiling instead of the
    # unrolled serial add chain.
    acc = jnp.dot(xb[0], g_ref[0], preferred_element_type=jnp.float32)
    for ci in range(1, cin):
        acc = acc + jnp.dot(xb[ci], g_ref[ci],
                            preferred_element_type=jnp.float32)

    # Per-co stores: 128-lane-aligned (vreg-granular) slices, unmasked vst.
    for co in range(cout):
        o_ref[co] = (acc[:, co * w8:(co + 1) * w8] + b_ref[co]).astype(o_ref.dtype)


def transition_up(x_nchw, weight, bias, *, row_block=None):
    """ConvTranspose2d(features, features, kernel=(2,2), stride=(2,2), padding=0).

    Args:
      x_nchw: (N, Cin, H, W) float32 (PyTorch NCHW convention), H even.
      weight: (Cin, Cout, 2, 2) PyTorch ConvTranspose2d weight layout.
      bias:   (Cout,)
      row_block: optional number of *input* rows per grid step (must be even,
        divide H, and row_block//2 must be a multiple of 8 unless it equals H//2).
    Returns:
      (N, Cout, 2H, 2W) in x's dtype.
    """
    N, C, H, W = x_nchw.shape
    Cin, Cout, KH, KW = weight.shape
    if Cin != C or (KH, KW) != (2, 2):
        raise ValueError(f"unexpected weight shape {weight.shape} for input {x_nchw.shape}")
    if H % 2 != 0:
        # TODO(synk): odd H would need a remainder row tile; not needed for this module.
        raise NotImplementedError("transition_up requires an even input height")

    H2 = H // 2          # packed row-pairs
    W2 = 2 * W           # K dim of G (parity * W + j)
    W8 = 8 * W           # per-co lane block of the packed output (4 rows x 2W)
    L = Cout * W8        # total lane width of the fused matmul result

    # ---- row-tile selection (explicit errors instead of silent fallback) ----
    if row_block is None:
        TH2 = H2
        # Ensure >= 2 grid steps when N == 1 so both v7x TensorCores get work.
        if N == 1 and H2 % 16 == 0:
            TH2 = H2 // 2
    else:
        if row_block % 2 != 0 or H % row_block != 0:
            raise ValueError(f"row_block={row_block} must be even and divide H={H}")
        TH2 = row_block // 2
        if TH2 != H2 and TH2 % 8 != 0:
            raise ValueError(f"row_block//2={TH2} must be a multiple of 8 (or equal H//2)")

    f32 = jnp.float32
    bf16 = jnp.bfloat16

    # ---- constant structured weight matrix G (built once, O(Cin*Cout*W^2)) ----
    # Lane index decomposition: L = co*8W + (2p+kh)*2W + 2j + kw
    l_idx = jnp.arange(L)
    co_l = l_idx // W8
    rem = l_idx % W8
    q_l = rem // W2               # 2*p + kh
    c_l = rem % W2                # 2*j + kw
    p_l = q_l // 2
    kh_l = q_l % 2
    j_l = c_l // 2
    kw_l = c_l % 2
    # K index decomposition: k = p*W + j
    k_idx = jnp.arange(W2)
    p_k = k_idx // W
    j_k = k_idx % W

    sel = ((p_k[:, None] == p_l[None, :]) &
           (j_k[:, None] == j_l[None, :])).astype(f32)          # (2W, L) one-hot
    w_gather = weight.astype(f32)[:, co_l, kh_l, kw_l]          # (Cin, L)
    g_mats = (sel[None, :, :] * w_gather[:, None, :]).astype(bf16)   # (Cin, 2W, L)

    # Bias as (Cout, 1, 8W) rows (sublane-broadcast inside the kernel), kept f32.
    b_rows = jnp.broadcast_to(bias.astype(f32)[:, None, None], (Cout, 1, W8))

    # Free contiguous reshape: pack 2 consecutive input rows along the lane axis.
    x_pack = x_nchw.reshape(N, Cin, H2, W2)

    grid = (N, H2 // TH2)
    y_pack = pl.pallas_call(
        _transition_up_kernel,
        out_shape=jax.ShapeDtypeStruct((N, Cout, H2, W8), x_nchw.dtype),
        grid_spec=pltpu.PrefetchScalarGridSpec(
            num_scalar_prefetch=0,
            grid=grid,
            in_specs=[
                # x: one (Cin, TH2, 2W) slab per step, straight from the NCHW view.
                pl.BlockSpec((None, Cin, TH2, W2), lambda n, h: (n, 0, h, 0)),
                # constants: full arrays, resident in VMEM across the grid.
                pl.BlockSpec((Cin, W2, L), lambda n, h: (0, 0, 0)),
                pl.BlockSpec((Cout, 1, W8), lambda n, h: (0, 0, 0)),
            ],
            # Output written lane-dense (minor dim 8W) in the packed NCHW view.
            out_specs=pl.BlockSpec((None, Cout, TH2, W8),
                                   lambda n, h: (n, 0, h, 0)),
        ),
        compiler_params=pltpu.CompilerParams(
            dimension_semantics=("parallel", "parallel")),
    )(x_pack, g_mats, b_rows)

    # Free contiguous reshape back to the final NCHW layout.
    return y_pack.reshape(N, Cout, 2 * H, 2 * W)


def _reference(x_nchw, weight, bias):
    # Pure-JAX reference of ConvTranspose2d(kernel=2, stride=2, padding=0).
    N, C, H, W = x_nchw.shape
    Cin, Cout, KH, KW = weight.shape
    t = jnp.einsum('ncij,cokl->nijklo', x_nchw, weight,
                   precision=jax.lax.Precision.HIGHEST)
    t = jnp.transpose(t, (0, 5, 1, 3, 2, 4)).reshape(N, Cout, H * KH, W * KW)
    return t + bias[None, :, None, None]


if __name__ == "__main__":
    key = jax.random.PRNGKey(0)
    k_x, k_w, k_b = jax.random.split(key, 3)

    # Transition_Up(features=4), input (N=2, C=4, H=16, W=16).
    features = 4
    # Round test data to bf16-representable values so the kernel (bf16 operands,
    # f32 accumulate) and the f32 reference agree to f32-accumulation error.
    x = jax.random.normal(k_x, (2, features, 16, 16), dtype=jnp.float32)
    x = x.astype(jnp.bfloat16).astype(jnp.float32)
    weight = 0.1 * jax.random.normal(k_w, (features, features, 2, 2),
                                     dtype=jnp.float32)
    weight = weight.astype(jnp.bfloat16).astype(jnp.float32)
    bias = 0.1 * jax.random.normal(k_b, (features,), dtype=jnp.float32)
    bias = bias.astype(jnp.bfloat16).astype(jnp.float32)

    y = jax.block_until_ready(jax.jit(transition_up)(x, weight, bias))
    y_ref = _reference(x, weight, bias)

    assert y.shape == (2, features, 32, 32), y.shape
    max_err = float(jnp.max(jnp.abs(y - y_ref)))
    assert jnp.allclose(y, y_ref, atol=1e-5, rtol=1e-5), f"max abs err {max_err}"

    print("KERNEL_OK")
</pallas_src>

<mosaic_0001>
module attributes {stable_mosaic.version = 11 : i64} {
  func.func @_transition_up_kernel(%arg0: i32, %arg1: i32, %arg2: memref<1x4x8x32xf32, #tpu.memory_space<vmem>>, %arg3: memref<4x32x512xbf16, #tpu.memory_space<vmem>>, %arg4: memref<4x1x128xf32, #tpu.memory_space<vmem>>, %arg5: memref<1x4x8x128xf32, #tpu.memory_space<vmem>>) attributes {dimension_semantics = [#tpu.dimension_semantics<parallel>, #tpu.dimension_semantics<parallel>], iteration_bounds = array<i64: 2, 1>, scalar_prefetch = 0 : i64, scratch_operands = 0 : i64, tpu.core_type = #tpu.core_type<tc>, window_params = [{transform_indices = @transform_0, window_bounds = array<i64: 1, 4, 8, 32>}, {pipeline_mode = #tpu.pipeline_mode<synchronous>, transform_indices = @transform_1, window_bounds = array<i64: 4, 32, 512>}, {pipeline_mode = #tpu.pipeline_mode<synchronous>, transform_indices = @transform_2, window_bounds = array<i64: 4, 1, 128>}, {transform_indices = @transform_3, window_bounds = array<i64: 1, 4, 8, 128>}]} {
    %c0 = arith.constant 0 : index
    %c0_0 = arith.constant 0 : index
    %c0_1 = arith.constant 0 : index
    %c0_2 = arith.constant 0 : index
    %0 = vector.load %arg2[%c0, %c0_0, %c0_1, %c0_2] : memref<1x4x8x32xf32, #tpu.memory_space<vmem>>, vector<1x4x8x32xf32>
    %1 = vector.shape_cast %0 : vector<1x4x8x32xf32> to vector<4x8x32xf32>
    %2 = arith.truncf %1 : vector<4x8x32xf32> to vector<4x8x32xbf16>
    %3 = vector.extract_strided_slice %2 {offsets = [0, 0, 0], sizes = [1, 8, 32], strides = [1, 1, 1]} : vector<4x8x32xbf16> to vector<1x8x32xbf16>
    %4 = vector.shape_cast %3 : vector<1x8x32xbf16> to vector<8x32xbf16>
    %c0_3 = arith.constant 0 : index
    %c0_4 = arith.constant 0 : index
    %c0_5 = arith.constant 0 : index
    %5 = vector.load %arg3[%c0_3, %c0_4, %c0_5] : memref<4x32x512xbf16, #tpu.memory_space<vmem>>, vector<1x32x512xbf16>
    %6 = vector.shape_cast %5 : vector<1x32x512xbf16> to vector<32x512xbf16>
    %cst = arith.constant dense<0.000000e+00> : vector<8x512xf32>
    %7 = tpu.matmul %4, %6, %cst {dimension_numbers = #tpu.dot_dimension_numbers<[1], [0], [0], [1], [0, 0, 1, 1], [], []>} : vector<8x32xbf16>, vector<32x512xbf16>, vector<8x512xf32> -> vector<8x512xf32>
    %8 = vector.extract_strided_slice %2 {offsets = [1, 0, 0], sizes = [1, 8, 32], strides = [1, 1, 1]} : vector<4x8x32xbf16> to vector<1x8x32xbf16>
    %9 = vector.shape_cast %8 : vector<1x8x32xbf16> to vector<8x32xbf16>
    %c1 = arith.constant 1 : index
    %c0_6 = arith.constant 0 : index
    %c0_7 = arith.constant 0 : index
    %10 = vector.load %arg3[%c1, %c0_6, %c0_7] : memref<4x32x512xbf16, #tpu.memory_space<vmem>>, vector<1x32x512xbf16>
    %11 = vector.shape_cast %10 : vector<1x32x512xbf16> to vector<32x512xbf16>
    %cst_8 = arith.constant dense<0.000000e+00> : vector<8x512xf32>
    %12 = tpu.matmul %9, %11, %cst_8 {dimension_numbers = #tpu.dot_dimension_numbers<[1], [0], [0], [1], [0, 0, 1, 1], [], []>} : vector<8x32xbf16>, vector<32x512xbf16>, vector<8x512xf32> -> vector<8x512xf32>
    %13 = arith.addf %7, %12 : vector<8x512xf32>
    %14 = vector.extract_strided_slice %2 {offsets = [2, 0, 0], sizes = [1, 8, 32], strides = [1, 1, 1]} : vector<4x8x32xbf16> to vector<1x8x32xbf16>
    %15 = vector.shape_cast %14 : vector<1x8x32xbf16> to vector<8x32xbf16>
    %c2 = arith.constant 2 : index
    %c0_9 = arith.constant 0 : index
    %c0_10 = arith.constant 0 : index
    %16 = vector.load %arg3[%c2, %c0_9, %c0_10] : memref<4x32x512xbf16, #tpu.memory_space<vmem>>, vector<1x32x512xbf16>
    %17 = vector.shape_cast %16 : vector<1x32x512xbf16> to vector<32x512xbf16>
    %cst_11 = arith.constant dense<0.000000e+00> : vector<8x512xf32>
    %18 = tpu.matmul %15, %17, %cst_11 {dimension_numbers = #tpu.dot_dimension_numbers<[1], [0], [0], [1], [0, 0, 1, 1], [], []>} : vector<8x32xbf16>, vector<32x512xbf16>, vector<8x512xf32> -> vector<8x512xf32>
    %19 = arith.addf %13, %18 : vector<8x512xf32>
    %20 = vector.extract_strided_slice %2 {offsets = [3, 0, 0], sizes = [1, 8, 32], strides = [1, 1, 1]} : vector<4x8x32xbf16> to vector<1x8x32xbf16>
    %21 = vector.shape_cast %20 : vector<1x8x32xbf16> to vector<8x32xbf16>
    %c3 = arith.constant 3 : index
    %c0_12 = arith.constant 0 : index
    %c0_13 = arith.constant 0 : index
    %22 = vector.load %arg3[%c3, %c0_12, %c0_13] : memref<4x32x512xbf16, #tpu.memory_space<vmem>>, vector<1x32x512xbf16>
    %23 = vector.shape_cast %22 : vector<1x32x512xbf16> to vector<32x512xbf16>
    %cst_14 = arith.constant dense<0.000000e+00> : vector<8x512xf32>
    %24 = tpu.matmul %21, %23, %cst_14 {dimension_numbers = #tpu.dot_dimension_numbers<[1], [0], [0], [1], [0, 0, 1, 1], [], []>} : vector<8x32xbf16>, vector<32x512xbf16>, vector<8x512xf32> -> vector<8x512xf32>
    %25 = arith.addf %19, %24 : vector<8x512xf32>
    %26 = vector.extract_strided_slice %25 {offsets = [0, 0], sizes = [8, 128], strides = [1, 1]} : vector<8x512xf32> to vector<8x128xf32>
    %c0_15 = arith.constant 0 : index
    %c0_16 = arith.constant 0 : index
    %c0_17 = arith.constant 0 : index
    %27 = vector.load %arg4[%c0_15, %c0_16, %c0_17] : memref<4x1x128xf32, #tpu.memory_space<vmem>>, vector<1x1x128xf32>
    %28 = vector.shape_cast %27 : vector<1x1x128xf32> to vector<1x128xf32>
    %29 = vector.broadcast %28 : vector<1x128xf32> to vector<8x128xf32>
    %30 = arith.addf %26, %29 : vector<8x128xf32>
    %c0_18 = arith.constant 0 : index
    %c0_19 = arith.constant 0 : index
    %c0_20 = arith.constant 0 : index
    %c0_21 = arith.constant 0 : index
    %31 = vector.load %arg5[%c0_18, %c0_19, %c0_20, %c0_21] : memref<1x4x8x128xf32, #tpu.memory_space<vmem>>, vector<1x1x8x128xf32>
    %32 = vector.shape_cast %31 : vector<1x1x8x128xf32> to vector<8x128xf32>
    %33 = vector.shape_cast %30 : vector<8x128xf32> to vector<1x1x8x128xf32>
    tpu.vector_store %arg5[%c0_18, %c0_19, %c0_20, %c0_21], %33 {strides = array<i32>} : memref<1x4x8x128xf32, #tpu.memory_space<vmem>>, vector<1x1x8x128xf32>,
    %34 = vector.extract_strided_slice %25 {offsets = [0, 128], sizes = [8, 128], strides = [1, 1]} : vector<8x512xf32> to vector<8x128xf32>
    %c1_22 = arith.constant 1 : index
    %c0_23 = arith.constant 0 : index
    %c0_24 = arith.constant 0 : index
    %35 = vector.load %arg4[%c1_22, %c0_23, %c0_24] : memref<4x1x128xf32, #tpu.memory_space<vmem>>, vector<1x1x128xf32>
    %36 = vector.shape_cast %35 : vector<1x1x128xf32> to vector<1x128xf32>
    %37 = vector.broadcast %36 : vector<1x128xf32> to vector<8x128xf32>
    %38 = arith.addf %34, %37 : vector<8x128xf32>
    %c0_25 = arith.constant 0 : index
    %c1_26 = arith.constant 1 : index
    %c0_27 = arith.constant 0 : index
    %c0_28 = arith.constant 0 : index
    %39 = vector.load %arg5[%c0_25, %c1_26, %c0_27, %c0_28] : memref<1x4x8x128xf32, #tpu.memory_space<vmem>>, vector<1x1x8x128xf32>
    %40 = vector.shape_cast %39 : vector<1x1x8x128xf32> to vector<8x128xf32>
    %41 = vector.shape_cast %38 : vector<8x128xf32> to vector<1x1x8x128xf32>
    tpu.vector_store %arg5[%c0_25, %c1_26, %c0_27, %c0_28], %41 {strides = array<i32>} : memref<1x4x8x128xf32, #tpu.memory_space<vmem>>, vector<1x1x8x128xf32>,
    %42 = vector.extract_strided_slice %25 {offsets = [0, 256], sizes = [8, 128], strides = [1, 1]} : vector<8x512xf32> to vector<8x128xf32>
    %c2_29 = arith.constant 2 : index
    %c0_30 = arith.constant 0 : index
    %c0_31 = arith.constant 0 : index
    %43 = vector.load %arg4[%c2_29, %c0_30, %c0_31] : memref<4x1x128xf32, #tpu.memory_space<vmem>>, vector<1x1x128xf32>
    %44 = vector.shape_cast %43 : vector<1x1x128xf32> to vector<1x128xf32>
    %45 = vector.broadcast %44 : vector<1x128xf32> to vector<8x128xf32>
    %46 = arith.addf %42, %45 : vector<8x128xf32>
    %c0_32 = arith.constant 0 : index
    %c2_33 = arith.constant 2 : index
    %c0_34 = arith.constant 0 : index
    %c0_35 = arith.constant 0 : index
    %47 = vector.load %arg5[%c0_32, %c2_33, %c0_34, %c0_35] : memref<1x4x8x128xf32, #tpu.memory_space<vmem>>, vector<1x1x8x128xf32>
    %48 = vector.shape_cast %47 : vector<1x1x8x128xf32> to vector<8x128xf32>
    %49 = vector.shape_cast %46 : vector<8x128xf32> to vector<1x1x8x128xf32>
    tpu.vector_store %arg5[%c0_32, %c2_33, %c0_34, %c0_35], %49 {strides = array<i32>} : memref<1x4x8x128xf32, #tpu.memory_space<vmem>>, vector<1x1x8x128xf32>,
    %50 = vector.extract_strided_slice %25 {offsets = [0, 384], sizes = [8, 128], strides = [1, 1]} : vector<8x512xf32> to vector<8x128xf32>
    %c3_36 = arith.constant 3 : index
    %c0_37 = arith.constant 0 : index
    %c0_38 = arith.constant 0 : index
    %51 = vector.load %arg4[%c3_36, %c0_37, %c0_38] : memref<4x1x128xf32, #tpu.memory_space<vmem>>, vector<1x1x128xf32>
    %52 = vector.shape_cast %51 : vector<1x1x128xf32> to vector<1x128xf32>
    %53 = vector.broadcast %52 : vector<1x128xf32> to vector<8x128xf32>
    %54 = arith.addf %50, %53 : vector<8x128xf32>
    %c0_39 = arith.constant 0 : index
    %c3_40 = arith.constant 3 : index
    %c0_41 = arith.constant 0 : index
    %c0_42 = arith.constant 0 : index
    %55 = vector.load %arg5[%c0_39, %c3_40, %c0_41, %c0_42] : memref<1x4x8x128xf32, #tpu.memory_space<vmem>>, vector<1x1x8x128xf32>
    %56 = vector.shape_cast %55 : vector<1x1x8x128xf32> to vector<8x128xf32>
    %57 = vector.shape_cast %54 : vector<8x128xf32> to vector<1x1x8x128xf32>
    tpu.vector_store %arg5[%c0_39, %c3_40, %c0_41, %c0_42], %57 {strides = array<i32>} : memref<1x4x8x128xf32, #tpu.memory_space<vmem>>, vector<1x1x8x128xf32>,
    return
  }
  func.func @transform_0(%arg0: i32, %arg1: i32) -> (i32, i32, i32, i32) {
    %c0_i32 = arith.constant 0 : i32
    %c0_i32_0 = arith.constant 0 : i32
    %c0_i32_1 = arith.constant 0 : i32
    return %arg0, %c0_i32, %arg1, %c0_i32_0 : i32, i32, i32, i32
  }
  func.func @transform_1(%arg0: i32, %arg1: i32) -> (i32, i32, i32) {
    %c0_i32 = arith.constant 0 : i32
    %c0_i32_0 = arith.constant 0 : i32
    %c0_i32_1 = arith.constant 0 : i32
    %c0_i32_2 = arith.constant 0 : i32
    return %c0_i32, %c0_i32_0, %c0_i32_1 : i32, i32, i32
  }
  func.func @transform_2(%arg0: i32, %arg1: i32) -> (i32, i32, i32) {
    %c0_i32 = arith.constant 0 : i32
    %c0_i32_0 = arith.constant 0 : i32
    %c0_i32_1 = arith.constant 0 : i32
    %c0_i32_2 = arith.constant 0 : i32
    return %c0_i32, %c0_i32_0, %c0_i32_1 : i32, i32, i32
  }
  func.func @transform_3(%arg0: i32, %arg1: i32) -> (i32, i32, i32, i32) {
    %c0_i32 = arith.constant 0 : i32
    %c0_i32_0 = arith.constant 0 : i32
    %c0_i32_1 = arith.constant 0 : i32
    return %arg0, %c0_i32, %arg1, %c0_i32_0 : i32, i32, i32, i32
  }
}

</mosaic_0001>

<llo_original>
// kernel: transition_up.1
$region0: #{transition_up.1}
  #allocation0 [shape = 'u32[]', space=smem, size = 0x4, offset = 0x4, fixed_abs, tag = 'smem constant byte address 0x4 - core index']
  #allocation1 [shape = 'u32[144,128]{1,0:T(1,128)}', space=vmem, size = 0x12000, scoped, tag = 'internal scratch']
  %s0 = inlined_call_operand.vmem [shape: f32[2,4,8,32], index: 0, kind: input, shape index: {}]
  %s1 = inlined_call_operand.vmem [shape: bf16[4,32,512], index: 1, kind: input, shape index: {}]
  %s2 = inlined_call_operand.vmem [shape: f32[4,1,128], index: 2, kind: input, shape index: {}]
  %s3 = inlined_call_operand.vmem [shape: f32[2,4,8,128], index: 3, kind: output, shape index: {}]
  %s4 = sld [smem:[#allocation0]]
  $region45: #{transition_up.1} parent=0
    _
  %s6 = ssub.s32 1, %s4
  %s7 = scalar_select 0, %s6, %s4
  loop: start=0, step=1, limit=4
  $region2: #{transition_up.1} parent=0 // loop_pre_header
    _
  $region3: #{transition_up.1} parent=0 // loop_header
    %s9 = sphi 0, %s13
    %p10 = scmp.ge.s32.totalorder %s9, 4
    %s16 = sphi 0, %s28
    %s17 = sphi 0, %s24
    %s18 = sphi 0, %s16
    %s19 = sphi 0, %s17
    %s20 = sphi 0, %s18
    %s21 = sphi 0, %s19
    %s33 = sphi 0, %s35
    %s36 = sphi 0, %s33
    %s37 = sphi 0, %s36
    %s53 = sphi 0, %s37
    %s57 = sphi 0, %s57
    %s59 = sphi 0, %s57
    %s60 = sphi 0, %s59
    %s74 = sphi 0, %s60
    %s78 = sphi 0, %s78
    %s80 = sphi 0, %s78
    %s81 = sphi 0, %s80
    %s95 = sphi 0, %s81
    %s103 = sphi 0, %s105
    %s106 = sphi 0, %s103
    %s107 = sphi 0, %s106
    %s123 = sphi 0, %s107
  $region4: #{transition_up.1} parent=0 // loop_header_branch
    %12 = sbr.rel (%p10) target = $region8
  $region5: #{transition_up.1} parent=0 // loop_body
    %s14 = ssub.s32 %s9, 1
    %s15 = ssub.s32 %s9, 2
    %s22 = sadd.s32 1, %s17
    %p23 = scmp.ge.s32.totalorder %s22, 1
    %s24 = scalar_select %p23, 0, %s22
    %s25 = sadd.s32 1, %s16
    %s26 = scalar_select %p23, %s25, %s16
    %p27 = scmp.ge.s32.totalorder %s26, 2
    %s28 = scalar_select %p27, 0, %s26
    %s29 = ssub.s32 %s16, %s28
    %s30 = ssub.s32 %s17, %s24
    %s31 = sor.u32 %s29, %s30
    %p32 = scmp.eq.s32.totalorder %s31, 0
    %s34 = sadd.s32 %s33, 1
    %s35 = scalar_select %p32, %s33, %s34
    %p38 = pneg %p32
    %p39 = scmp.eq.s32.totalorder %s9, 1
    %p40 = por %p38, %p39
    %p41 = scmp.ne.s32.totalorder %s33, %s36
    %p42 = scmp.eq.s32.totalorder %s9, 0
    %p43 = por %p41, %p42
    %p44 = scmp.ne.s32.totalorder %s33, %s36
    %p45 = scmp.eq.s32.totalorder %s14, 1
    %p46 = por %p44, %p45
    %p47 = scmp.ne.s32.totalorder %s36, %s37
    %p48 = scmp.eq.s32.totalorder %s14, 0
    %p49 = por %p47, %p48
    %p50 = scmp.ne.s32.totalorder %s36, %s37
    %p51 = scmp.eq.s32.totalorder %s15, 1
    %p52 = por %p50, %p51
    %p54 = scmp.ne.s32.totalorder %s37, %s53
    %p55 = scmp.eq.s32.totalorder %s15, 0
    %p56 = por %p54, %p55
    %s58 = sadd.s32 %s57, 1
    %p61 = scmp.eq.s32.totalorder %s9, 1
    %p62 = scmp.ne.s32.totalorder %s57, %s59
    %p63 = scmp.eq.s32.totalorder %s9, 0
    %p64 = por %p62, %p63
    %p65 = scmp.ne.s32.totalorder %s57, %s59
    %p66 = scmp.eq.s32.totalorder %s14, 1
    %p67 = por %p65, %p66
    %p68 = scmp.ne.s32.totalorder %s59, %s60
    %p69 = scmp.eq.s32.totalorder %s14, 0
    %p70 = por %p68, %p69
    %p71 = scmp.ne.s32.totalorder %s59, %s60
    %p72 = scmp.eq.s32.totalorder %s15, 1
    %p73 = por %p71, %p72
    %p75 = scmp.ne.s32.totalorder %s60, %s74
    %p76 = scmp.eq.s32.totalorder %s15, 0
    %p77 = por %p75, %p76
    %s79 = sadd.s32 %s78, 1
    %p82 = scmp.eq.s32.totalorder %s9, 1
    %p83 = scmp.ne.s32.totalorder %s78, %s80
    %p84 = scmp.eq.s32.totalorder %s9, 0
    %p85 = por %p83, %p84
    %p86 = scmp.ne.s32.totalorder %s78, %s80
    %p87 = scmp.eq.s32.totalorder %s14, 1
    %p88 = por %p86, %p87
    %p89 = scmp.ne.s32.totalorder %s80, %s81
    %p90 = scmp.eq.s32.totalorder %s14, 0
    %p91 = por %p89, %p90
    %p92 = scmp.ne.s32.totalorder %s80, %s81
    %p93 = scmp.eq.s32.totalorder %s15, 1
    %p94 = por %p92, %p93
    %p96 = scmp.ne.s32.totalorder %s81, %s95
    %p97 = scmp.eq.s32.totalorder %s15, 0
    %p98 = por %p96, %p97
    %s99 = ssub.s32 %s16, %s28
    %s100 = ssub.s32 %s17, %s24
    %s101 = sor.u32 %s99, %s100
    %p102 = scmp.eq.s32.totalorder %s101, 0
    %s104 = sadd.s32 %s103, 1
    %s105 = scalar_select %p102, %s103, %s104
    %p108 = pneg %p102
    %p109 = scmp.eq.s32.totalorder %s9, 1
    %p110 = por %p108, %p109
    %p111 = scmp.ne.s32.totalorder %s103, %s106
    %p112 = scmp.eq.s32.totalorder %s9, 0
    %p113 = por %p111, %p112
    %p114 = scmp.ne.s32.totalorder %s103, %s106
    %p115 = scmp.eq.s32.totalorder %s14, 1
    %p116 = por %p114, %p115
    %p117 = scmp.ne.s32.totalorder %s106, %s107
    %p118 = scmp.eq.s32.totalorder %s14, 0
    %p119 = por %p117, %p118
    %p120 = scmp.ne.s32.totalorder %s106, %s107
    %p121 = scmp.eq.s32.totalorder %s15, 1
    %p122 = por %p120, %p121
    %p124 = scmp.ne.s32.totalorder %s107, %s123
    %p125 = scmp.eq.s32.totalorder %s15, 0
    %p126 = por %p124, %p125
    %p127 = scmp.le.s32.totalorder 1, %s9
    %p128 = scmp.lt.s32.totalorder %s9, 3
    %p129 = pnand %p127, %p128
    %p130 = pneg %p129
    // Predicated region
    $region9: #{transition_up.1} parent=5 // pred_check
      _
    $region10: #{transition_up.1} parent=5 // pred_check_branch
      %132 = sbr.rel (%p129) target = $region12
    $region11: #{transition_up.1} parent=5 // pred_region
      %s133 = ssub.s32 %s9, 1
      // Predicated region
      $region13: #{transition_up.1} parent=11 // pred_check
        %p134 = pneg %p70
      $region14: #{transition_up.1} parent=11 // pred_check_branch
        %136 = sbr.rel (%p134) target = $region16
      $region15: #{transition_up.1} parent=11 // pred_region
        _
      $region16: #{transition_up.1} parent=11 // pred_fallthru
        _
      // Predicated region
      $region17: #{transition_up.1} parent=11 // pred_check
        %p137 = pneg %p91
      $region18: #{transition_up.1} parent=11 // pred_check_branch
        %139 = sbr.rel (%p137) target = $region20
      $region19: #{transition_up.1} parent=11 // pred_region
        _
      $region20: #{transition_up.1} parent=11 // pred_fallthru
        _
    $region12: #{transition_up.1} parent=5 // pred_fallthru
      _
    %p140 = scmp.lt.s32.totalorder %s9, 2
    // Predicated region
    $region21: #{transition_up.1} parent=5 // pred_check
      %p141 = pneg %p140
    $region22: #{transition_up.1} parent=5 // pred_check_branch
      %143 = sbr.rel (%p141) target = $region24
    $region23: #{transition_up.1} parent=5 // pred_region
      // Predicated region
      $region25: #{transition_up.1} parent=23 // pred_check
        %p144 = pneg %p43
      $region26: #{transition_up.1} parent=23 // pred_check_branch
        %146 = sbr.rel (%p144) target = $region28
      $region27: #{transition_up.1} parent=23 // pred_region
        %p147 = scmp.lt.s32.totalorder %s16, 1
        %s148 = scalar_select %p147, %s16, 1
        %p149 = scmp.lt.s32.totalorder %s17, 0
        %s150 = scalar_select %p149, %s17, 0
        %s151 = smul.addr %s148, 4
        %s152 = sadd.s32 %s150, %s151
        %s153 = smul.addr %s152, 8
        %s154 = scalar_lea.vmem %s0, %s153
      $region28: #{transition_up.1} parent=23 // pred_fallthru
        _
    $region24: #{transition_up.1} parent=5 // pred_fallthru
      _
    %p155 = scmp.le.s32.totalorder 1, %s9
    %p156 = scmp.lt.s32.totalorder %s9, 3
    %p157 = pnand %p155, %p156
    %p158 = pneg %p157
    // Predicated region
    $region29: #{transition_up.1} parent=5 // pred_check
      _
    $region30: #{transition_up.1} parent=5 // pred_check_branch
      %160 = sbr.rel (%p157) target = $region32
    $region31: #{transition_up.1} parent=5 // pred_region
      %s161 = ssub.s32 %s9, 1
      %p162 = scmp.lt.s32.totalorder %s18, 1
      %s163 = scalar_select %p162, %s18, 1
      %p164 = scmp.lt.s32.totalorder %s19, 0
      %s165 = scalar_select %p164, %s19, 0
      %s166 = smul.addr %s163, 4
      %s167 = sadd.s32 %s165, %s166
      %s168 = smul.addr %s167, 8
      %s169 = scalar_lea.vmem %s0, %s168
      %p170 = pneg %p49
      %p171 = pneg %p46
      %p172 = pneg %p70
      %p173 = pneg %p67
      %p174 = pneg %p91
      %p175 = pneg %p88
      %p176 = pneg %p119
      %p177 = pneg %p116
      %p178 = scmp.lt.s32.totalorder %s18, 1
      %s179 = scalar_select %p178, %s18, 1
      %p180 = scmp.lt.s32.totalorder %s19, 0
      %s181 = scalar_select %p180, %s19, 0
      %s182 = smul.addr %s179, 4
      %s183 = sadd.s32 %s181, %s182
      %s184 = smul.addr %s183, 8
      %s185 = scalar_lea.vmem %s3, %s184
      %p186 = scmp.lt.s32.totalorder %s18, 1
      %s187 = scalar_select %p186, %s18, 1
      %p188 = scmp.lt.s32.totalorder %s19, 0
      %s189 = scalar_select %p188, %s19, 0
      %s190 = smul.addr %s187, 4
      %s191 = sadd.s32 %s189, %s190
      %s192 = smul.addr %s191, 8
      %s193 = scalar_lea.vmem %s0, %s192
      %p194 = scmp.lt.s32.totalorder %s18, 1
      %s195 = scalar_select %p194, %s18, 1
      %p196 = scmp.lt.s32.totalorder %s19, 0
      %s197 = scalar_select %p196, %s19, 0
      %s198 = smul.addr %s195, 4
      %s199 = sadd.s32 %s197, %s198
      %s200 = smul.addr %s199, 8
      %s201 = scalar_lea.vmem %s3, %s200
      %v203 = vld [vmem:[%s193] sm:$0xff]
      %v204 = vld [vmem:[%s193 + $0x8] sm:$0xff]
      %v205 = vld [vmem:[%s193 + $0x10] sm:$0xff]
      %v206 = vld [vmem:[%s193 + $0x18] sm:$0xff]
      %v207 = vpack.c.bf16 %v203, %v203
      %v208 = vpack.c.bf16 %v204, %v204
      %v209 = vpack.c.bf16 %v205, %v205
      %v210 = vpack.c.bf16 %v206, %v206
      %v211 = vld [vmem:[%s1] sm:$0xff]
      %v212 = vld [vmem:[%s1 + $0x8] sm:$0xff]
      %v213 = vld [vmem:[%s1 + $0x10] sm:$0xff]
      %v214 = vld [vmem:[%s1 + $0x18] sm:$0xff]
      %v215 = vld [vmem:[%s1 + $0x20] sm:$0xff]
      %v216 = vld [vmem:[%s1 + $0x28] sm:$0xff]
      %v217 = vld [vmem:[%s1 + $0x30] sm:$0xff]
      %v218 = vld [vmem:[%s1 + $0x38] sm:$0xff]
      %s219 = scalar_lea.vmem %s1, 64
      %v220 = vld [vmem:[%s219] sm:$0xff]
      %v221 = vld [vmem:[%s219 + $0x8] sm:$0xff]
      %v222 = vld [vmem:[%s219 + $0x10] sm:$0xff]
      %v223 = vld [vmem:[%s219 + $0x18] sm:$0xff]
      %v224 = vld [vmem:[%s219 + $0x20] sm:$0xff]
      %v225 = vld [vmem:[%s219 + $0x28] sm:$0xff]
      %v226 = vld [vmem:[%s219 + $0x30] sm:$0xff]
      %v227 = vld [vmem:[%s219 + $0x38] sm:$0xff]
      %v236 = vunpack.c.l.b16 %v220
      %v237 = vunpack.c.h.b16 %v220
      %v238 = vunpack.c.l.b16 %v221
      %v239 = vunpack.c.h.b16 %v221
      %v240 = vunpack.c.l.b16 %v222
      %v241 = vunpack.c.h.b16 %v222
      %v242 = vunpack.c.l.b16 %v223
      %v243 = vunpack.c.h.b16 %v223
      %v244 = vunpack.c.l.b16 %v224
      %v245 = vunpack.c.h.b16 %v224
      %v246 = vunpack.c.l.b16 %v225
      %v247 = vunpack.c.h.b16 %v225
      %v248 = vunpack.c.l.b16 %v226
      %v249 = vunpack.c.h.b16 %v226
      %v250 = vunpack.c.l.b16 %v227
      %v251 = vunpack.c.h.b16 %v227
      %v252 = vpack.c.b16 %v240, %v236
      %v253 = vpack.c.b16 %v241, %v237
      %v254 = vpack.c.b16 %v242, %v238
      %v255 = vpack.c.b16 %v243, %v239
      %v256 = vpack.c.b16 %v248, %v244
      %v257 = vpack.c.b16 %v249, %v245
      %v258 = vpack.c.b16 %v250, %v246
      %v259 = vpack.c.b16 %v251, %v247
      %vm268 = vcmask 261120
      %v270 = vsel %vm268, %v208, 0
      %272 = vmatprep.subr.bf16.mxu0 %v253
      %273 = vmatpush1.bf16.msra.mxu0 %v252
      %274 = vmatprep.subr.bf16.mxu0 %v257
      %275 = vmatpush1.bf16.msra.mxu0 %v256
      %276 = vmatprep.subr.bf16.mxu0 0
      %277 = vmatpush1.bf16.msra.mxu0 0
      %278 = vmatprep.subr.bf16.mxu0 0
      %279 = vmatpush1.bf16.msra.mxu0 0
      %280 = vmatprep.subr.bf16.mxu0 0
      %281 = vmatpush1.bf16.msra.mxu0 0
      %282 = vmatprep.subr.bf16.mxu0 0
      %283 = vmatpush1.bf16.msra.mxu0 0
      %284 = vmatprep.subr.bf16.mxu0 0
      %285 = vmatpush1.bf16.msra.mxu0 0
      %286 = vmatprep.subr.bf16.mxu0 0
      %287 = vmatpush1.bf16.msra.mxu0 0
      %288 = vmatprep.subr.bf16.mxu0 0
      %289 = vmatpush1.bf16.msra.mxu0 0
      %290 = vmatprep.subr.bf16.mxu0 0
      %291 = vmatpush1.bf16.msra.mxu0 0
      %292 = vmatprep.subr.bf16.mxu0 0
      %293 = vmatpush1.bf16.msra.mxu0 0
      %294 = vmatprep.subr.bf16.mxu0 0
      %295 = vmatpush1.bf16.msra.mxu0 0
      %296 = vmatprep.subr.bf16.mxu0 0
      %297 = vmatpush1.bf16.msra.mxu0 0
      %298 = vmatprep.subr.bf16.mxu0 0
      %299 = vmatpush1.bf16.msra.mxu0 0
      %300 = vmatprep.subr.bf16.mxu0 0
      %301 = vmatpush1.bf16.msra.mxu0 0
      %302 = vmatprep.subr.bf16.mxu0 0
      %303 = vmatpush1.bf16.msra.mxu0 0
      %304 = vmatprep.mubr.bf16.mxu0 0
      %305 = vmatmul.mubr.bf16.gmra.mrb[0].mxu0 %v270
      %v306 = vpop.f32.mrb[0].mxu0
      %v307 = vadd.f32 0.0, %v306
      %v308 = vpop.f32.mrb[0].mxu0
      %v309 = vadd.f32 0.0, %v308
      %v310 = vpop.f32.mrb[0].mxu0
      %v311 = vpop.f32.mrb[0].mxu0
      %312 = vdwg.mxu0
      %313 = vmatprep.subr.bf16.mxu0 %v255
      %314 = vmatpush1.bf16.msra.mxu0 %v254
      %315 = vmatprep.subr.bf16.mxu0 %v259
      %316 = vmatpush1.bf16.msra.mxu0 %v258
      %317 = vmatprep.subr.bf16.mxu0 0
      %318 = vmatpush1.bf16.msra.mxu0 0
      %319 = vmatprep.subr.bf16.mxu0 0
      %320 = vmatpush1.bf16.msra.mxu0 0
      %321 = vmatprep.subr.bf16.mxu0 0
      %322 = vmatpush1.bf16.msra.mxu0 0
      %323 = vmatprep.subr.bf16.mxu0 0
      %324 = vmatpush1.bf16.msra.mxu0 0
      %325 = vmatprep.subr.bf16.mxu0 0
      %326 = vmatpush1.bf16.msra.mxu0 0
      %327 = vmatprep.subr.bf16.mxu0 0
      %328 = vmatpush1.bf16.msra.mxu0 0
      %329 = vmatprep.subr.bf16.mxu0 0
      %330 = vmatpush1.bf16.msra.mxu0 0
      %331 = vmatprep.subr.bf16.mxu0 0
      %332 = vmatpush1.bf16.msra.mxu0 0
      %333 = vmatprep.subr.bf16.mxu0 0
      %334 = vmatpush1.bf16.msra.mxu0 0
      %335 = vmatprep.subr.bf16.mxu0 0
      %336 = vmatpush1.bf16.msra.mxu0 0
      %337 = vmatprep.subr.bf16.mxu0 0
      %338 = vmatpush1.bf16.msra.mxu0 0
      %339 = vmatprep.subr.bf16.mxu0 0
      %340 = vmatpush1.bf16.msra.mxu0 0
      %341 = vmatprep.subr.bf16.mxu0 0
      %342 = vmatpush1.bf16.msra.mxu0 0
      %343 = vmatprep.subr.bf16.mxu0 0
      %344 = vmatpush1.bf16.msra.mxu0 0
      %345 = vmatprep.mubr.bf16.mxu0 0
      %346 = vmatmul.mubr.bf16.gmra.mrb[0].mxu0 %v270
      %v347 = vpop.f32.mrb[0].mxu0
      %v348 = vadd.f32 0.0, %v347
      %v349 = vpop.f32.mrb[0].mxu0
      %v350 = vadd.f32 0.0, %v349
      %v351 = vpop.f32.mrb[0].mxu0
      %v352 = vpop.f32.mrb[0].mxu0
      %353 = vdwg.mxu0
      %v362 = vunpack.c.l.b16 %v211
      %v363 = vunpack.c.h.b16 %v211
      %v364 = vunpack.c.l.b16 %v212
      %v365 = vunpack.c.h.b16 %v212
      %v366 = vunpack.c.l.b16 %v213
      %v367 = vunpack.c.h.b16 %v213
      %v368 = vunpack.c.l.b16 %v214
      %v369 = vunpack.c.h.b16 %v214
      %v370 = vunpack.c.l.b16 %v215
      %v371 = vunpack.c.h.b16 %v215
      %v372 = vunpack.c.l.b16 %v216
      %v373 = vunpack.c.h.b16 %v216
      %v374 = vunpack.c.l.b16 %v217
      %v375 = vunpack.c.h.b16 %v217
      %v376 = vunpack.c.l.b16 %v218
      %v377 = vunpack.c.h.b16 %v218
      %v378 = vpack.c.b16 %v366, %v362
      %v379 = vpack.c.b16 %v367, %v363
      %v380 = vpack.c.b16 %v368, %v364
      %v381 = vpack.c.b16 %v369, %v365
      %v382 = vpack.c.b16 %v374, %v370
      %v383 = vpack.c.b16 %v375, %v371
      %v384 = vpack.c.b16 %v376, %v372
      %v385 = vpack.c.b16 %v377, %v373
      %v395 = vsel %vm268, %v207, 0
      %397 = vmatprep.subr.bf16.mxu0 %v379
      %398 = vmatpush1.bf16.msra.mxu0 %v378
      %399 = vmatprep.subr.bf16.mxu0 %v383
      %400 = vmatpush1.bf16.msra.mxu0 %v382
      %401 = vmatprep.subr.bf16.mxu0 0
      %402 = vmatpush1.bf16.msra.mxu0 0
      %403 = vmatprep.subr.bf16.mxu0 0
      %404 = vmatpush1.bf16.msra.mxu0 0
      %405 = vmatprep.subr.bf16.mxu0 0
      %406 = vmatpush1.bf16.msra.mxu0 0
      %407 = vmatprep.subr.bf16.mxu0 0
      %408 = vmatpush1.bf16.msra.mxu0 0
      %409 = vmatprep.subr.bf16.mxu0 0
      %410 = vmatpush1.bf16.msra.mxu0 0
      %411 = vmatprep.subr.bf16.mxu0 0
      %412 = vmatpush1.bf16.msra.mxu0 0
      %413 = vmatprep.subr.bf16.mxu0 0
      %414 = vmatpush1.bf16.msra.mxu0 0
      %415 = vmatprep.subr.bf16.mxu0 0
      %416 = vmatpush1.bf16.msra.mxu0 0
      %417 = vmatprep.subr.bf16.mxu0 0
      %418 = vmatpush1.bf16.msra.mxu0 0
      %419 = vmatprep.subr.bf16.mxu0 0
      %420 = vmatpush1.bf16.msra.mxu0 0
      %421 = vmatprep.subr.bf16.mxu0 0
      %422 = vmatpush1.bf16.msra.mxu0 0
      %423 = vmatprep.subr.bf16.mxu0 0
      %424 = vmatpush1.bf16.msra.mxu0 0
      %425 = vmatprep.subr.bf16.mxu0 0
      %426 = vmatpush1.bf16.msra.mxu0 0
      %427 = vmatprep.subr.bf16.mxu0 0
      %428 = vmatpush1.bf16.msra.mxu0 0
      %429 = vmatprep.mubr.bf16.mxu0 0
      %430 = vmatmul.mubr.bf16.gmra.mrb[0].mxu0 %v395
      %v431 = vpop.f32.mrb[0].mxu0
      %v432 = vadd.f32 %v307, %v431
      %v433 = vpop.f32.mrb[0].mxu0
      %v434 = vadd.f32 %v309, %v433
      %v435 = vpop.f32.mrb[0].mxu0
      %v436 = vpop.f32.mrb[0].mxu0
      %437 = vdwg.mxu0
      %438 = vmatprep.subr.bf16.mxu0 %v381
      %439 = vmatpush1.bf16.msra.mxu0 %v380
      %440 = vmatprep.subr.bf16.mxu0 %v385
      %441 = vmatpush1.bf16.msra.mxu0 %v384
      %442 = vmatprep.subr.bf16.mxu0 0
      %443 = vmatpush1.bf16.msra.mxu0 0
      %444 = vmatprep.subr.bf16.mxu0 0
      %445 = vmatpush1.bf16.msra.mxu0 0
      %446 = vmatprep.subr.bf16.mxu0 0
      %447 = vmatpush1.bf16.msra.mxu0 0
      %448 = vmatprep.subr.bf16.mxu0 0
      %449 = vmatpush1.bf16.msra.mxu0 0
      %450 = vmatprep.subr.bf16.mxu0 0
      %451 = vmatpush1.bf16.msra.mxu0 0
      %452 = vmatprep.subr.bf16.mxu0 0
      %453 = vmatpush1.bf16.msra.mxu0 0
      %454 = vmatprep.subr.bf16.mxu0 0
      %455 = vmatpush1.bf16.msra.mxu0 0
      %456 = vmatprep.subr.bf16.mxu0 0
      %457 = vmatpush1.bf16.msra.mxu0 0
      %458 = vmatprep.subr.bf16.mxu0 0
      %459 = vmatpush1.bf16.msra.mxu0 0
      %460 = vmatprep.subr.bf16.mxu0 0
      %461 = vmatpush1.bf16.msra.mxu0 0
      %462 = vmatprep.subr.bf16.mxu0 0
      %463 = vmatpush1.bf16.msra.mxu0 0
      %464 = vmatprep.subr.bf16.mxu0 0
      %465 = vmatpush1.bf16.msra.mxu0 0
      %466 = vmatprep.subr.bf16.mxu0 0
      %467 = vmatpush1.bf16.msra.mxu0 0
      %468 = vmatprep.subr.bf16.mxu0 0
      %469 = vmatpush1.bf16.msra.mxu0 0
      %470 = vmatprep.mubr.bf16.mxu0 0
      %471 = vmatmul.mubr.bf16.gmra.mrb[0].mxu0 %v395
      %v472 = vpop.f32.mrb[0].mxu0
      %v473 = vadd.f32 %v348, %v472
      %v474 = vpop.f32.mrb[0].mxu0
      %v475 = vadd.f32 %v350, %v474
      %v476 = vpop.f32.mrb[0].mxu0
      %v477 = vpop.f32.mrb[0].mxu0
      %478 = vdwg.mxu0
      %s479 = scalar_lea.vmem %s1, 128
      %v480 = vld [vmem:[%s479] sm:$0xff]
      %v481 = vld [vmem:[%s479 + $0x8] sm:$0xff]
      %v482 = vld [vmem:[%s479 + $0x10] sm:$0xff]
      %v483 = vld [vmem:[%s479 + $0x18] sm:$0xff]
      %v484 = vld [vmem:[%s479 + $0x20] sm:$0xff]
      %v485 = vld [vmem:[%s479 + $0x28] sm:$0xff]
      %v486 = vld [vmem:[%s479 + $0x30] sm:$0xff]
      %v487 = vld [vmem:[%s479 + $0x38] sm:$0xff]
      %v496 = vunpack.c.l.b16 %v480
      %v497 = vunpack.c.h.b16 %v480
      %v498 = vunpack.c.l.b16 %v481
      %v499 = vunpack.c.h.b16 %v481
      %v500 = vunpack.c.l.b16 %v482
      %v501 = vunpack.c.h.b16 %v482
      %v502 = vunpack.c.l.b16 %v483
      %v503 = vunpack.c.h.b16 %v483
      %v504 = vunpack.c.l.b16 %v484
      %v505 = vunpack.c.h.b16 %v484
      %v506 = vunpack.c.l.b16 %v485
      %v507 = vunpack.c.h.b16 %v485
      %v508 = vunpack.c.l.b16 %v486
      %v509 = vunpack.c.h.b16 %v486
      %v510 = vunpack.c.l.b16 %v487
      %v511 = vunpack.c.h.b16 %v487
      %v512 = vpack.c.b16 %v500, %v496
      %v513 = vpack.c.b16 %v501, %v497
      %v514 = vpack.c.b16 %v502, %v498
      %v515 = vpack.c.b16 %v503, %v499
      %v516 = vpack.c.b16 %v508, %v504
      %v517 = vpack.c.b16 %v509, %v505
      %v518 = vpack.c.b16 %v510, %v506
      %v519 = vpack.c.b16 %v511, %v507
      %v529 = vsel %vm268, %v209, 0
      %531 = vmatprep.subr.bf16.mxu0 %v513
      %532 = vmatpush1.bf16.msra.mxu0 %v512
      %533 = vmatprep.subr.bf16.mxu0 %v517
      %534 = vmatpush1.bf16.msra.mxu0 %v516
      %535 = vmatprep.subr.bf16.mxu0 0
      %536 = vmatpush1.bf16.msra.mxu0 0
      %537 = vmatprep.subr.bf16.mxu0 0
      %538 = vmatpush1.bf16.msra.mxu0 0
      %539 = vmatprep.subr.bf16.mxu0 0
      %540 = vmatpush1.bf16.msra.mxu0 0
      %541 = vmatprep.subr.bf16.mxu0 0
      %542 = vmatpush1.bf16.msra.mxu0 0
      %543 = vmatprep.subr.bf16.mxu0 0
      %544 = vmatpush1.bf16.msra.mxu0 0
      %545 = vmatprep.subr.bf16.mxu0 0
      %546 = vmatpush1.bf16.msra.mxu0 0
      %547 = vmatprep.subr.bf16.mxu0 0
      %548 = vmatpush1.bf16.msra.mxu0 0
      %549 = vmatprep.subr.bf16.mxu0 0
      %550 = vmatpush1.bf16.msra.mxu0 0
      %551 = vmatprep.subr.bf16.mxu0 0
      %552 = vmatpush1.bf16.msra.mxu0 0
      %553 = vmatprep.subr.bf16.mxu0 0
      %554 = vmatpush1.bf16.msra.mxu0 0
      %555 = vmatprep.subr.bf16.mxu0 0
      %556 = vmatpush1.bf16.msra.mxu0 0
      %557 = vmatprep.subr.bf16.mxu0 0
      %558 = vmatpush1.bf16.msra.mxu0 0
      %559 = vmatprep.subr.bf16.mxu0 0
      %560 = vmatpush1.bf16.msra.mxu0 0
      %561 = vmatprep.subr.bf16.mxu0 0
      %562 = vmatpush1.bf16.msra.mxu0 0
      %563 = vmatprep.mubr.bf16.mxu0 0
      %564 = vmatmul.mubr.bf16.gmra.mrb[0].mxu0 %v529
      %v565 = vpop.f32.mrb[0].mxu0
      %v566 = vadd.f32 0.0, %v565
      %v567 = vpop.f32.mrb[0].mxu0
      %v568 = vadd.f32 0.0, %v567
      %v569 = vpop.f32.mrb[0].mxu0
      %v570 = vpop.f32.mrb[0].mxu0
      %571 = vdwg.mxu0
      %572 = vmatprep.subr.bf16.mxu0 %v515
      %573 = vmatpush1.bf16.msra.mxu0 %v514
      %574 = vmatprep.subr.bf16.mxu0 %v519
      %575 = vmatpush1.bf16.msra.mxu0 %v518
      %576 = vmatprep.subr.bf16.mxu0 0
      %577 = vmatpush1.bf16.msra.mxu0 0
      %578 = vmatprep.subr.bf16.mxu0 0
      %579 = vmatpush1.bf16.msra.mxu0 0
      %580 = vmatprep.subr.bf16.mxu0 0
      %581 = vmatpush1.bf16.msra.mxu0 0
      %582 = vmatprep.subr.bf16.mxu0 0
      %583 = vmatpush1.bf16.msra.mxu0 0
      %584 = vmatprep.subr.bf16.mxu0 0
      %585 = vmatpush1.bf16.msra.mxu0 0
      %586 = vmatprep.subr.bf16.mxu0 0
      %587 = vmatpush1.bf16.msra.mxu0 0
      %588 = vmatprep.subr.bf16.mxu0 0
      %589 = vmatpush1.bf16.msra.mxu0 0
      %590 = vmatprep.subr.bf16.mxu0 0
      %591 = vmatpush1.bf16.msra.mxu0 0
      %592 = vmatprep.subr.bf16.mxu0 0
      %593 = vmatpush1.bf16.msra.mxu0 0
      %594 = vmatprep.subr.bf16.mxu0 0
      %595 = vmatpush1.bf16.msra.mxu0 0
      %596 = vmatprep.subr.bf16.mxu0 0
      %597 = vmatpush1.bf16.msra.mxu0 0
      %598 = vmatprep.subr.bf16.mxu0 0
      %599 = vmatpush1.bf16.msra.mxu0 0
      %600 = vmatprep.subr.bf16.mxu0 0
      %601 = vmatpush1.bf16.msra.mxu0 0
      %602 = vmatprep.subr.bf16.mxu0 0
      %603 = vmatpush1.bf16.msra.mxu0 0
      %604 = vmatprep.mubr.bf16.mxu0 0
      %605 = vmatmul.mubr.bf16.gmra.mrb[0].mxu0 %v529
      %v606 = vpop.f32.mrb[0].mxu0
      %v607 = vadd.f32 0.0, %v606
      %v608 = vpop.f32.mrb[0].mxu0
      %v609 = vadd.f32 0.0, %v608
      %v610 = vpop.f32.mrb[0].mxu0
      %v611 = vpop.f32.mrb[0].mxu0
      %612 = vdwg.mxu0
      %v613 = vadd.f32 %v432, %v566
      %v614 = vadd.f32 %v434, %v568
      %v615 = vadd.f32 %v473, %v607
      %v616 = vadd.f32 %v475, %v609
      %s617 = scalar_lea.vmem %s1, 192
      %v618 = vld [vmem:[%s617] sm:$0xff]
      %v619 = vld [vmem:[%s617 + $0x8] sm:$0xff]
      %v620 = vld [vmem:[%s617 + $0x10] sm:$0xff]
      %v621 = vld [vmem:[%s617 + $0x18] sm:$0xff]
      %v622 = vld [vmem:[%s617 + $0x20] sm:$0xff]
      %v623 = vld [vmem:[%s617 + $0x28] sm:$0xff]
      %v624 = vld [vmem:[%s617 + $0x30] sm:$0xff]
      %v625 = vld [vmem:[%s617 + $0x38] sm:$0xff]
      %v634 = vunpack.c.l.b16 %v618
      %v635 = vunpack.c.h.b16 %v618
      %v636 = vunpack.c.l.b16 %v619
      %v637 = vunpack.c.h.b16 %v619
      %v638 = vunpack.c.l.b16 %v620
      %v639 = vunpack.c.h.b16 %v620
      %v640 = vunpack.c.l.b16 %v621
      %v641 = vunpack.c.h.b16 %v621
      %v642 = vunpack.c.l.b16 %v622
      %v643 = vunpack.c.h.b16 %v622
      %v644 = vunpack.c.l.b16 %v623
      %v645 = vunpack.c.h.b16 %v623
      %v646 = vunpack.c.l.b16 %v624
      %v647 = vunpack.c.h.b16 %v624
      %v648 = vunpack.c.l.b16 %v625
      %v649 = vunpack.c.h.b16 %v625
      %v650 = vpack.c.b16 %v638, %v634
      %v651 = vpack.c.b16 %v639, %v635
      %v652 = vpack.c.b16 %v640, %v636
      %v653 = vpack.c.b16 %v641, %v637
      %v654 = vpack.c.b16 %v646, %v642
      %v655 = vpack.c.b16 %v647, %v643
      %v656 = vpack.c.b16 %v648, %v644
      %v657 = vpack.c.b16 %v649, %v645
      %v667 = vsel %vm268, %v210, 0
      %669 = vmatprep.subr.bf16.mxu0 %v651
      %670 = vmatpush1.bf16.msra.mxu0 %v650
      %671 = vmatprep.subr.bf16.mxu0 %v655
      %672 = vmatpush1.bf16.msra.mxu0 %v654
      %673 = vmatprep.subr.bf16.mxu0 0
      %674 = vmatpush1.bf16.msra.mxu0 0
      %675 = vmatprep.subr.bf16.mxu0 0
      %676 = vmatpush1.bf16.msra.mxu0 0
      %677 = vmatprep.subr.bf16.mxu0 0
      %678 = vmatpush1.bf16.msra.mxu0 0
      %679 = vmatprep.subr.bf16.mxu0 0
      %680 = vmatpush1.bf16.msra.mxu0 0
      %681 = vmatprep.subr.bf16.mxu0 0
      %682 = vmatpush1.bf16.msra.mxu0 0
      %683 = vmatprep.subr.bf16.mxu0 0
      %684 = vmatpush1.bf16.msra.mxu0 0
      %685 = vmatprep.subr.bf16.mxu0 0
      %686 = vmatpush1.bf16.msra.mxu0 0
      %687 = vmatprep.subr.bf16.mxu0 0
      %688 = vmatpush1.bf16.msra.mxu0 0
      %689 = vmatprep.subr.bf16.mxu0 0
      %690 = vmatpush1.bf16.msra.mxu0 0
      %691 = vmatprep.subr.bf16.mxu0 0
      %692 = vmatpush1.bf16.msra.mxu0 0
      %693 = vmatprep.subr.bf16.mxu0 0
      %694 = vmatpush1.bf16.msra.mxu0 0
      %695 = vmatprep.subr.bf16.mxu0 0
      %696 = vmatpush1.bf16.msra.mxu0 0
      %697 = vmatprep.subr.bf16.mxu0 0
      %698 = vmatpush1.bf16.msra.mxu0 0
      %699 = vmatprep.subr.bf16.mxu0 0
      %700 = vmatpush1.bf16.msra.mxu0 0
      %701 = vmatprep.mubr.bf16.mxu0 0
      %702 = vmatmul.mubr.bf16.gmra.mrb[0].mxu0 %v667
      %v703 = vpop.f32.mrb[0].mxu0
      %v704 = vadd.f32 0.0, %v703
      %v705 = vpop.f32.mrb[0].mxu0
      %v706 = vadd.f32 0.0, %v705
      %v707 = vpop.f32.mrb[0].mxu0
      %v708 = vpop.f32.mrb[0].mxu0
      %709 = vdwg.mxu0
      %710 = vmatprep.subr.bf16.mxu0 %v653
      %711 = vmatpush1.bf16.msra.mxu0 %v652
      %712 = vmatprep.subr.bf16.mxu0 %v657
      %713 = vmatpush1.bf16.msra.mxu0 %v656
      %714 = vmatprep.subr.bf16.mxu0 0
      %715 = vmatpush1.bf16.msra.mxu0 0
      %716 = vmatprep.subr.bf16.mxu0 0
      %717 = vmatpush1.bf16.msra.mxu0 0
      %718 = vmatprep.subr.bf16.mxu0 0
      %719 = vmatpush1.bf16.msra.mxu0 0
      %720 = vmatprep.subr.bf16.mxu0 0
      %721 = vmatpush1.bf16.msra.mxu0 0
      %722 = vmatprep.subr.bf16.mxu0 0
      %723 = vmatpush1.bf16.msra.mxu0 0
      %724 = vmatprep.subr.bf16.mxu0 0
      %725 = vmatpush1.bf16.msra.mxu0 0
      %726 = vmatprep.subr.bf16.mxu0 0
      %727 = vmatpush1.bf16.msra.mxu0 0
      %728 = vmatprep.subr.bf16.mxu0 0
      %729 = vmatpush1.bf16.msra.mxu0 0
      %730 = vmatprep.subr.bf16.mxu0 0
      %731 = vmatpush1.bf16.msra.mxu0 0
      %732 = vmatprep.subr.bf16.mxu0 0
      %733 = vmatpush1.bf16.msra.mxu0 0
      %734 = vmatprep.subr.bf16.mxu0 0
      %735 = vmatpush1.bf16.msra.mxu0 0
      %736 = vmatprep.subr.bf16.mxu0 0
      %737 = vmatpush1.bf16.msra.mxu0 0
      %738 = vmatprep.subr.bf16.mxu0 0
      %739 = vmatpush1.bf16.msra.mxu0 0
      %740 = vmatprep.subr.bf16.mxu0 0
      %741 = vmatpush1.bf16.msra.mxu0 0
      %742 = vmatprep.mubr.bf16.mxu0 0
      %743 = vmatmul.mubr.bf16.gmra.mrb[0].mxu0 %v667
      %v744 = vpop.f32.mrb[0].mxu0
      %v745 = vadd.f32 0.0, %v744
      %v746 = vpop.f32.mrb[0].mxu0
      %v747 = vadd.f32 0.0, %v746
      %v748 = vpop.f32.mrb[0].mxu0
      %v749 = vpop.f32.mrb[0].mxu0
      %750 = vdwg.mxu0
      %v751 = vadd.f32 %v613, %v704
      %v752 = vadd.f32 %v614, %v706
      %v753 = vadd.f32 %v615, %v745
      %v754 = vadd.f32 %v616, %v747
      %v755 = vld [vmem:[%s2] sm:$0x1]
      %v757 = vlaneseq
      %v758 = vshrl.u32 %v757, 7
      %v759 = vsub.s32 0, %v758
      %v760 = vrot.slane %v755, %v759
      %v762 = vadd.f32 %v751, %v760
      %763 = vst [vmem:[%s201] sm:$0xff] %v762
      %s764 = scalar_lea.vmem %s2, 1
      %v765 = vld [vmem:[%s764] sm:$0x1]
      %v767 = vlaneseq
      %v768 = vshrl.u32 %v767, 7
      %v769 = vsub.s32 0, %v768
      %v770 = vrot.slane %v765, %v769
      %v772 = vadd.f32 %v752, %v770
      %s773 = scalar_lea.vmem %s201, 8
      %774 = vst [vmem:[%s773] sm:$0xff] %v772
      %s775 = scalar_lea.vmem %s2, 2
      %v776 = vld [vmem:[%s775] sm:$0x1]
      %v778 = vlaneseq
      %v779 = vshrl.u32 %v778, 7
      %v780 = vsub.s32 0, %v779
      %v781 = vrot.slane %v776, %v780
      %v783 = vadd.f32 %v753, %v781
      %s784 = scalar_lea.vmem %s201, 16
      %785 = vst [vmem:[%s784] sm:$0xff] %v783
      %s786 = scalar_lea.vmem %s2, 3
      %v787 = vld [vmem:[%s786] sm:$0x1]
      %v789 = vlaneseq
      %v790 = vshrl.u32 %v789, 7
      %v791 = vsub.s32 0, %v790
      %v792 = vrot.slane %v787, %v791
      %v794 = vadd.f32 %v754, %v792
      %s795 = scalar_lea.vmem %s201, 24
      %796 = vst [vmem:[%s795] sm:$0xff] %v794
      %p797 = scmp.lt.s32.totalorder %s18, 1
      %s798 = scalar_select %p797, %s18, 1
      %p799 = scmp.lt.s32.totalorder %s19, 0
      %s800 = scalar_select %p799, %s19, 0
      %s801 = smul.addr %s798, 4
      %s802 = sadd.s32 %s800, %s801
      %s803 = smul.addr %s802, 8
      %s804 = scalar_lea.vmem %s3, %s803
      // Predicated region
      $region33: #{transition_up.1} parent=31 // pred_check
        %p805 = pneg %p116
      $region34: #{transition_up.1} parent=31 // pred_check_branch
        %807 = sbr.rel (%p805) target = $region36
      $region35: #{transition_up.1} parent=31 // pred_region
        _
      $region36: #{transition_up.1} parent=31 // pred_fallthru
        _
    $region32: #{transition_up.1} parent=5 // pred_fallthru
      _
    %p808 = scmp.le.s32.totalorder 2, %s9
    // Predicated region
    $region37: #{transition_up.1} parent=5 // pred_check
      %p809 = pneg %p808
    $region38: #{transition_up.1} parent=5 // pred_check_branch
      %811 = sbr.rel (%p809) target = $region40
    $region39: #{transition_up.1} parent=5 // pred_region
      %s812 = ssub.s32 %s9, 2
      // Predicated region
      $region41: #{transition_up.1} parent=39 // pred_check
        %p813 = pneg %p122
      $region42: #{transition_up.1} parent=39 // pred_check_branch
        %815 = sbr.rel (%p813) target = $region44
      $region43: #{transition_up.1} parent=39 // pred_region
        %p816 = scmp.lt.s32.totalorder %s20, 1
        %s817 = scalar_select %p816, %s20, 1
        %p818 = scmp.lt.s32.totalorder %s21, 0
        %s819 = scalar_select %p818, %s21, 0
        %s820 = smul.addr %s817, 4
        %s821 = sadd.s32 %s819, %s820
        %s822 = smul.addr %s821, 8
        %s823 = scalar_lea.vmem %s3, %s822
      $region44: #{transition_up.1} parent=39 // pred_fallthru
        _
    $region40: #{transition_up.1} parent=5 // pred_fallthru
      _
  $region6: #{transition_up.1} parent=0 // loop_footer
    %s13 = sadd.s32 1, %s9
  $region7: #{transition_up.1} parent=0 // loop_footer_branch
    %8 = sbr.rel target = $region3
  $region8: #{transition_up.1} parent=0 // loop_exit
    _

</llo_original>
